<compile_context>
chip_gen: v5e
topology: v5e:2x2
jax: 0.10.0
libtpu: 0.0.40
codegen_flags: <defaults>
</compile_context>

<pallas_src>
import jax
import jax.numpy as jnp
from jax.experimental import pallas as pl
from jax.experimental.pallas import tpu as pltpu


def _sse_kernel(pre_ref, tgt_ref, out_ref):
    """Accumulate per-lane sum of squared differences.

    pre_ref / tgt_ref: (tile_g, sublanes, w) block of the lane-dense view.
    out_ref:           (1, sublanes, w) f32 accumulator, resident across the
                       inner (reduction) grid axis.
    """
    @pl.when(pl.program_id(1) == 0)
    def _init():
        out_ref[...] = jnp.zeros_like(out_ref)

    d = pre_ref[...].astype(jnp.float32) - tgt_ref[...].astype(jnp.float32)
    # Reduce over the leading (tiled) axis only: pure VPU adds, no XLU.
    out_ref[...] += jnp.sum(d * d, axis=0, keepdims=True)


def _default_num_parts():
    """TensorCores per chip sharing the grid (megacore split of the outer axis)."""
    try:
        kind = jax.devices()[0].device_kind.lower()
    except Exception:
        return 1
    # 2 TensorCores per device: v4, v5p, v7x.  Single TC: v5e, v6e.
    if "v4" in kind or "v5p" in kind or "v7" in kind:
        return 2
    return 1


def mcrmse_loss(pre, target, num_scored=5, eps=1e-6, *,
                tile_g_max=None, num_parts=None):
    assert pre.shape == target.shape, (pre.shape, target.shape)
    assert pre.dtype == target.dtype, (pre.dtype, target.dtype)
    b, s, c = pre.shape
    assert c == num_scored, (c, num_scored)

    n_rows = b * s
    n_elems = n_rows * c
    itemsize = jnp.dtype(pre.dtype).itemsize
    packing = max(1, 4 // itemsize)          # 1 for f32, 2 for bf16/f16
    sublanes = 8 * packing                   # whole packed vregs per slab row
    w = 128 * c                              # lane-dense width (multiple of 128)
    slab_elems = sublanes * w
    slab_bytes = slab_elems * itemsize

    if num_parts is None:
        num_parts = _default_num_parts()
    # Keep 2 inputs x 2 pipeline buffers within ~40 MiB live VMEM (v7x-safe).
    if tile_g_max is None:
        tile_g_max = max(1, (40 << 20) // (4 * slab_bytes))

    pre_flat = pre.reshape(-1)               # free bitcast reshape
    tgt_flat = target.reshape(-1)

    sse_cols = jnp.zeros((c,), jnp.float32)
    g_main = n_elems // slab_elems           # number of full lane-dense slabs
    kernel_elems = 0

    if g_main > 0:
        num_parts = max(1, min(num_parts, g_main))
        per_part = g_main // num_parts
        tiles_per_part = int(pl.cdiv(per_part, tile_g_max))
        tile_g = per_part // tiles_per_part
        g_kernel = num_parts * tiles_per_part * tile_g   # exact tiling, no padded slabs
        kernel_elems = g_kernel * slab_elems

        def to_view(flat):
            main = flat if kernel_elems == n_elems else flat[:kernel_elems]
            return main.reshape(g_kernel, sublanes, w)    # free when aligned

        pre_v = to_view(pre_flat)
        tgt_v = to_view(tgt_flat)

        block_bytes = tile_g * slab_bytes
        out_block_bytes = sublanes * w * 4
        vmem_limit = int(4 * block_bytes + 4 * out_block_bytes + (8 << 20))

        cost = pl.CostEstimate(
            flops=3 * kernel_elems,
            transcendentals=0,
            bytes_accessed=2 * kernel_elems * itemsize + num_parts * out_block_bytes,
        )

        partials = pl.pallas_call(
            _sse_kernel,
            out_shape=jax.ShapeDtypeStruct((num_parts, sublanes, w), jnp.float32),
            grid_spec=pltpu.PrefetchScalarGridSpec(
                num_scalar_prefetch=0,
                grid=(num_parts, tiles_per_part),
                in_specs=[
                    pl.BlockSpec((tile_g, sublanes, w),
                                 lambda p, i: (p * tiles_per_part + i, 0, 0)),
                    pl.BlockSpec((tile_g, sublanes, w),
                                 lambda p, i: (p * tiles_per_part + i, 0, 0)),
                ],
                out_specs=pl.BlockSpec((1, sublanes, w), lambda p, i: (p, 0, 0)),
            ),
            compiler_params=pltpu.CompilerParams(
                dimension_semantics=("parallel", "arbitrary"),
                vmem_limit_bytes=vmem_limit,
                allow_input_fusion=[True, True],
            ),
            cost_estimate=cost,
        )(pre_v, tgt_v)

        sse_lanes = jnp.sum(partials, axis=(0, 1))                 # (w,)
        sse_cols = sse_cols + jnp.sum(sse_lanes.reshape(128, c), axis=0)

    # Tiny leftover (sub-slab tail + at most a few non-tiled slabs): plain JAX.
    if kernel_elems < n_elems:
        d = (pre_flat[kernel_elems:].astype(jnp.float32)
             - tgt_flat[kernel_elems:].astype(jnp.float32)).reshape(-1, c)
        sse_cols = sse_cols + jnp.sum(d * d, axis=0)

    mse = sse_cols / jnp.float32(n_rows)
    rmse = jnp.sqrt(mse + jnp.float32(eps))
    return jnp.sum(rmse) / jnp.float32(num_scored)


if __name__ == "__main__":
    def ref_loss(pre, target, num_scored, eps=1e-6):
        p = pre.astype(jnp.float32)
        t = target.astype(jnp.float32)
        mse = jnp.mean((p - t) ** 2, axis=(0, 1))
        return jnp.sum(jnp.sqrt(mse + eps)) / num_scored

    key = jax.random.PRNGKey(0)
    num_scored = 5
    cases = [
        (2, 512, jnp.float32),    # slab-aligned f32: pure-kernel fast path
        (3, 700, jnp.float32),    # unaligned f32: kernel + tiny JAX tail
        (2, 1024, jnp.bfloat16),  # slab-aligned bf16: 16-sublane packing
        (2, 8, jnp.float32),      # tiny input: pure-JAX fallback path
    ]

    for batch, seq, dtype in cases:
        key, k1, k2 = jax.random.split(key, 3)
        pre = jax.random.normal(k1, (batch, seq, num_scored),
                                dtype=jnp.float32).astype(dtype)
        target = jax.random.normal(k2, (batch, seq, num_scored),
                                   dtype=jnp.float32).astype(dtype)
        loss = jax.block_until_ready(
            mcrmse_loss(pre, target, num_scored=num_scored, eps=1e-6))
        ref = ref_loss(pre, target, num_scored)
        assert jnp.allclose(loss, ref, rtol=1e-4, atol=1e-5), (
            (batch, seq, str(dtype)), float(loss), float(ref))

    print("KERNEL_OK")
</pallas_src>

<mosaic_0001>
module attributes {stable_mosaic.version = 11 : i64} {
  func.func @_sse_kernel(%arg0: i32, %arg1: i32, %arg2: memref<1x8x640xf32, #tpu.memory_space<vmem>>, %arg3: memref<1x8x640xf32, #tpu.memory_space<vmem>>, %arg4: memref<1x8x640xf32, #tpu.memory_space<vmem>>) attributes {dimension_semantics = [#tpu.dimension_semantics<parallel>, #tpu.dimension_semantics<arbitrary>], iteration_bounds = array<i64: 1, 1>, scalar_prefetch = 0 : i64, scratch_operands = 0 : i64, tpu.core_type = #tpu.core_type<tc>, window_params = [{transform_indices = @transform_0, window_bounds = array<i64: 1, 8, 640>}, {transform_indices = @transform_1, window_bounds = array<i64: 1, 8, 640>}, {transform_indices = @transform_2, window_bounds = array<i64: 1, 8, 640>}]} {
    %c0_i32 = arith.constant 0 : i32
    %0 = arith.cmpi eq, %arg1, %c0_i32 : i32
    %1 = arith.extui %0 : i1 to i32
    %c0_i32_0 = arith.constant 0 : i32
    %2 = arith.cmpi ne, %1, %c0_i32_0 : i32
    scf.if %2 {
      %cst_12 = arith.constant 0.000000e+00 : f32
      %12 = vector.broadcast %cst_12 : f32 to vector<1x8x640xf32>
      %c0_13 = arith.constant 0 : index
      %c0_14 = arith.constant 0 : index
      %c0_15 = arith.constant 0 : index
      %13 = vector.load %arg4[%c0_13, %c0_14, %c0_15] : memref<1x8x640xf32, #tpu.memory_space<vmem>>, vector<1x8x640xf32>
      tpu.vector_store %arg4[%c0_13, %c0_14, %c0_15], %12 {strides = array<i32>} : memref<1x8x640xf32, #tpu.memory_space<vmem>>, vector<1x8x640xf32>,
    } else {
    }
    %c0 = arith.constant 0 : index
    %c0_1 = arith.constant 0 : index
    %c0_2 = arith.constant 0 : index
    %3 = vector.load %arg2[%c0, %c0_1, %c0_2] : memref<1x8x640xf32, #tpu.memory_space<vmem>>, vector<1x8x640xf32>
    %c0_3 = arith.constant 0 : index
    %c0_4 = arith.constant 0 : index
    %c0_5 = arith.constant 0 : index
    %4 = vector.load %arg3[%c0_3, %c0_4, %c0_5] : memref<1x8x640xf32, #tpu.memory_space<vmem>>, vector<1x8x640xf32>
    %5 = arith.subf %3, %4 : vector<1x8x640xf32>
    %c0_6 = arith.constant 0 : index
    %c0_7 = arith.constant 0 : index
    %c0_8 = arith.constant 0 : index
    %6 = vector.load %arg4[%c0_6, %c0_7, %c0_8] : memref<1x8x640xf32, #tpu.memory_space<vmem>>, vector<1x8x640xf32>
    %7 = arith.mulf %5, %5 : vector<1x8x640xf32>
    %cst = arith.constant dense<0.000000e+00> : vector<8x640xf32>
    %8 = vector.multi_reduction <add>, %7, %cst [0] : vector<1x8x640xf32> to vector<8x640xf32>
    %9 = vector.shape_cast %8 : vector<8x640xf32> to vector<1x8x640xf32>
    %10 = arith.addf %6, %9 : vector<1x8x640xf32>
    %c0_9 = arith.constant 0 : index
    %c0_10 = arith.constant 0 : index
    %c0_11 = arith.constant 0 : index
    %11 = vector.load %arg4[%c0_9, %c0_10, %c0_11] : memref<1x8x640xf32, #tpu.memory_space<vmem>>, vector<1x8x640xf32>
    tpu.vector_store %arg4[%c0_9, %c0_10, %c0_11], %10 {strides = array<i32>} : memref<1x8x640xf32, #tpu.memory_space<vmem>>, vector<1x8x640xf32>,
    return
  }
  func.func @transform_0(%arg0: i32, %arg1: i32) -> (i32, i32, i32) {
    %c1_i32 = arith.constant 1 : i32
    %0 = arith.muli %arg0, %c1_i32 : i32
    %1 = arith.addi %0, %arg1 : i32
    %c0_i32 = arith.constant 0 : i32
    %c0_i32_0 = arith.constant 0 : i32
    %c0_i32_1 = arith.constant 0 : i32
    return %1, %c0_i32, %c0_i32_0 : i32, i32, i32
  }
  func.func @transform_1(%arg0: i32, %arg1: i32) -> (i32, i32, i32) {
    %c1_i32 = arith.constant 1 : i32
    %0 = arith.muli %arg0, %c1_i32 : i32
    %1 = arith.addi %0, %arg1 : i32
    %c0_i32 = arith.constant 0 : i32
    %c0_i32_0 = arith.constant 0 : i32
    %c0_i32_1 = arith.constant 0 : i32
    return %1, %c0_i32, %c0_i32_0 : i32, i32, i32
  }
  func.func @transform_2(%arg0: i32, %arg1: i32) -> (i32, i32, i32) {
    %c0_i32 = arith.constant 0 : i32
    %c0_i32_0 = arith.constant 0 : i32
    %c0_i32_1 = arith.constant 0 : i32
    return %arg0, %c0_i32, %c0_i32_0 : i32, i32, i32
  }
}

</mosaic_0001>

<llo_original>
// kernel: tpu_custom_call.1
$region0: #{tpu_custom_call.1}
  #allocation0 [shape = 'u32[]', space=smem, size = 0x4, offset = 0x4, fixed_abs, tag = 'smem constant byte address 0x4 - core index']
  #allocation1 [shape = 'u32[72,128]{1,0:T(1,128)}', space=vmem, size = 0x9000, scoped, tag = 'internal scratch']
  %s0 = inlined_call_operand.hbm [shape: f32[1,8,640], index: 0, kind: input, shape index: {}]
  %s1 = inlined_call_operand.hbm [shape: f32[1,8,640], index: 1, kind: input, shape index: {}]
  %s2 = inlined_call_operand.hbm [shape: f32[1,8,640], index: 2, kind: output, shape index: {}]
  %s3 = sld [smem:[#allocation0]]
  $region30: #{tpu_custom_call.1} parent=0
    _
  %s5 = ssub.s32 1, %s3
  %s6 = scalar_select 0, %s5, %s3
  $region1: #{tpu_custom_call.1} parent=0
    #allocation2 [shape = 'u8[20480]{0}', space=vmem, size = 0x5000, scoped, tag = 'input window, operand 0, single buffered']
    #allocation3 [shape = 's32[1]{0}', space=sflag, size = 0x4, scoped, tag = 'scoped memory for tpu_custom_call.1']
    #allocation4 [shape = 's32[1]{0}', space=sflag, size = 0x4, scoped, tag = 'scoped memory for tpu_custom_call.1']
    #allocation5 [shape = 'u8[20480]{0}', space=vmem, size = 0x5000, scoped, tag = 'input window, operand 1, single buffered']
    #allocation6 [shape = 's32[1]{0}', space=sflag, size = 0x4, scoped, tag = 'scoped memory for tpu_custom_call.1']
    #allocation7 [shape = 'u8[20480]{0}', space=vmem, size = 0x5000, scoped, tag = 'output window, operand 0, single buffered']
    %7 = vsyncpa [#allocation3], 0
    %8 = vsyncpa [#allocation6], 0
    %9 = vsyncpa [#allocation4], 0
    // Predicated region
    $region2: #{tpu_custom_call.1} parent=1 // pred_check
      _
    $region3: #{tpu_custom_call.1} parent=1 // pred_check_branch
      %11 = sbr.rel (0) target = $region5
    $region4: #{tpu_custom_call.1} parent=1 // pred_region
      %s12 = sadd.s32 0, 0
      %14 = vsyncadd [#allocation3], 0
      %s15 = smul.addr %s12, 5
      %s16 = smul.addr %s15, 8
      %s17 = scalar_lea.hbm %s0, %s16
      %s19 = sshll.u32 %s17, 4
      %s20 = int_to_ptr.hbm [resolvable:$true] %s19
      %s21 = sshll.u32 [#allocation2], 4
      %s22 = int_to_ptr.vmem [resolvable:$true] %s21
      %24 = dma.hbm_to_vmem [thread:$0]  %s20, 640, %s22, [#allocation3]
    $region5: #{tpu_custom_call.1} parent=1 // pred_fallthru
      _
    // Predicated region
    $region6: #{tpu_custom_call.1} parent=1 // pred_check
      _
    $region7: #{tpu_custom_call.1} parent=1 // pred_check_branch
      %26 = sbr.rel (0) target = $region9
    $region8: #{tpu_custom_call.1} parent=1 // pred_region
      %s27 = sadd.s32 0, 0
      %29 = vsyncadd [#allocation6], 0
      %s30 = smul.addr %s27, 5
      %s31 = smul.addr %s30, 8
      %s32 = scalar_lea.hbm %s1, %s31
      %s34 = sshll.u32 %s32, 4
      %s35 = int_to_ptr.hbm [resolvable:$true] %s34
      %s36 = sshll.u32 [#allocation5], 4
      %s37 = int_to_ptr.vmem [resolvable:$true] %s36
      %39 = dma.hbm_to_vmem [thread:$0]  %s35, 640, %s37, [#allocation6]
    $region9: #{tpu_custom_call.1} parent=1 // pred_fallthru
      _
    // Predicated region
    $region10: #{tpu_custom_call.1} parent=1 // pred_check
      _
    $region11: #{tpu_custom_call.1} parent=1 // pred_check_branch
      %41 = sbr.rel (0) target = $region13
    $region12: #{tpu_custom_call.1} parent=1 // pred_region
      %43 = dma.done [#allocation3], 640
    $region13: #{tpu_custom_call.1} parent=1 // pred_fallthru
      _
    // Predicated region
    $region14: #{tpu_custom_call.1} parent=1 // pred_check
      _
    $region15: #{tpu_custom_call.1} parent=1 // pred_check_branch
      %45 = sbr.rel (0) target = $region17
    $region16: #{tpu_custom_call.1} parent=1 // pred_region
      %47 = dma.done [#allocation6], 640
    $region17: #{tpu_custom_call.1} parent=1 // pred_fallthru
      _
    %s48 = sadd.s32 0, 0
    %s49 = sadd.s32 0, 0
    %p50 = scmp.eq.s32.totalorder 0, 0
    // Predicated region
    $region18: #{tpu_custom_call.1} parent=1 // pred_check
      %p51 = pneg %p50
    $region19: #{tpu_custom_call.1} parent=1 // pred_check_branch
      %53 = sbr.rel (%p51) target = $region21
    $region20: #{tpu_custom_call.1} parent=1 // pred_region
      %54 = vst [vmem:[#allocation7] sm:$0xff] 0.0
      %55 = vst [vmem:[#allocation7 + $0x8] sm:$0xff] 0.0
      %56 = vst [vmem:[#allocation7 + $0x10] sm:$0xff] 0.0
      %57 = vst [vmem:[#allocation7 + $0x18] sm:$0xff] 0.0
      %58 = vst [vmem:[#allocation7 + $0x20] sm:$0xff] 0.0
    $region21: #{tpu_custom_call.1} parent=1 // pred_fallthru
      _
    %v59 = vld [vmem:[#allocation2] sm:$0xff]
    %v60 = vld [vmem:[#allocation2 + $0x8] sm:$0xff]
    %v61 = vld [vmem:[#allocation2 + $0x10] sm:$0xff]
    %v62 = vld [vmem:[#allocation2 + $0x18] sm:$0xff]
    %v63 = vld [vmem:[#allocation2 + $0x20] sm:$0xff]
    %v64 = vld [vmem:[#allocation5] sm:$0xff]
    %v65 = vld [vmem:[#allocation5 + $0x8] sm:$0xff]
    %v66 = vld [vmem:[#allocation5 + $0x10] sm:$0xff]
    %v67 = vld [vmem:[#allocation5 + $0x18] sm:$0xff]
    %v68 = vld [vmem:[#allocation5 + $0x20] sm:$0xff]
    %v69 = vsub.f32 %v59, %v64
    %v70 = vsub.f32 %v60, %v65
    %v71 = vsub.f32 %v61, %v66
    %v72 = vsub.f32 %v62, %v67
    %v73 = vsub.f32 %v63, %v68
    %v74 = vld [vmem:[#allocation7] sm:$0xff]
    %v75 = vld [vmem:[#allocation7 + $0x8] sm:$0xff]
    %v76 = vld [vmem:[#allocation7 + $0x10] sm:$0xff]
    %v77 = vld [vmem:[#allocation7 + $0x18] sm:$0xff]
    %v78 = vld [vmem:[#allocation7 + $0x20] sm:$0xff]
    %v79 = vmul.f32 %v69, %v69
    %v80 = vmul.f32 %v70, %v70
    %v81 = vmul.f32 %v71, %v71
    %v82 = vmul.f32 %v72, %v72
    %v83 = vmul.f32 %v73, %v73
    %v84 = vadd.f32 %v79, 0.0
    %v85 = vadd.f32 %v80, 0.0
    %v86 = vadd.f32 %v81, 0.0
    %v87 = vadd.f32 %v82, 0.0
    %v88 = vadd.f32 %v83, 0.0
    %v89 = vadd.f32 %v74, %v84
    %v90 = vadd.f32 %v75, %v85
    %v91 = vadd.f32 %v76, %v86
    %v92 = vadd.f32 %v77, %v87
    %v93 = vadd.f32 %v78, %v88
    %94 = vst [vmem:[#allocation7] sm:$0xff] %v89
    %95 = vst [vmem:[#allocation7 + $0x8] sm:$0xff] %v90
    %96 = vst [vmem:[#allocation7 + $0x10] sm:$0xff] %v91
    %97 = vst [vmem:[#allocation7 + $0x18] sm:$0xff] %v92
    %98 = vst [vmem:[#allocation7 + $0x20] sm:$0xff] %v93
    // Predicated region
    $region22: #{tpu_custom_call.1} parent=1 // pred_check
      _
    $region23: #{tpu_custom_call.1} parent=1 // pred_check_branch
      %100 = sbr.rel (0) target = $region25
    $region24: #{tpu_custom_call.1} parent=1 // pred_region
      %102 = vsyncadd [#allocation4], 0
      %s104 = sshll.u32 [#allocation7], 4
      %s105 = int_to_ptr.vmem [resolvable:$true] %s104
      %s106 = sshll.u32 %s2, 4
      %s107 = int_to_ptr.hbm [resolvable:$true] %s106
      %109 = dma.vmem_to_hbm [thread:$0]  %s105, 640, %s107, [#allocation4]
    $region25: #{tpu_custom_call.1} parent=1 // pred_fallthru
      _
    // Predicated region
    $region26: #{tpu_custom_call.1} parent=1 // pred_check
      _
    $region27: #{tpu_custom_call.1} parent=1 // pred_check_branch
      %111 = sbr.rel (0) target = $region29
    $region28: #{tpu_custom_call.1} parent=1 // pred_region
      %113 = dma.done [#allocation4], 640
    $region29: #{tpu_custom_call.1} parent=1 // pred_fallthru
      _
    %114 = vsyncpa [#allocation3], 1
    %115 = vsyncpa [#allocation6], 1
    %116 = vsyncpa [#allocation4], 1

</llo_original>
